<compile_context>
chip_gen: v6e
topology: v6e:2x2x1
jax: 0.10.0
libtpu: 0.0.40
codegen_flags: <defaults>
</compile_context>

<pallas_src>
import functools

import jax
import jax.numpy as jnp
from jax import lax
from jax.experimental import pallas as pl
from jax.experimental.pallas import tpu as pltpu


def _patch_band_kernel(x_ref, l_ref, perm_ref, o_ref, *,
                       patch_size, stride, n_parts):
    """One grid step == one row band of patches (n_w patches).

    x_ref    : (1, H, W)                 whole image (resident across bands)
    l_ref    : (P, n_w, W)      bf16     one-hot gather: L[j][c, w] = [w == c*s + j]
    perm_ref : (n_parts*P*P, P*P) bf16   one-hot lane-permute + part-sum
    o_ref    : (1, 1, n_w, P*P)          flattened patches of this band
    """
    P = patch_size
    r = pl.program_id(1)
    row0 = pl.multiple_of(r * stride, stride)
    band = x_ref[0, pl.ds(row0, P), :]                           # (P, W)

    if n_parts == 1:
        # Input already bf16-exact: skip the split (3x fewer MXU passes).
        parts = band.astype(jnp.bfloat16)                        # (P, W)
    else:
        # bf16x3 split: hi + mid + lo == band exactly (each part bf16-exact),
        # so the bf16 one-hot matmuls below reproduce the f32 input exactly.
        b32 = band.astype(jnp.float32)
        hi = b32.astype(jnp.bfloat16)
        rem = b32 - hi.astype(jnp.float32)
        mid = rem.astype(jnp.bfloat16)
        lo = (rem - mid.astype(jnp.float32)).astype(jnp.bfloat16)
        parts = jnp.concatenate([hi, mid, lo], axis=0)           # (3P, W)

    # P gather matmuls (K = W): nj[c, p*P + i] = part_p[i, c*s + j]
    # (exactly one one-hot hit per output element -> exact, bf16-valued).
    pieces = []
    for j in range(P):                                           # small static loop
        nj = lax.dot_general(
            l_ref[j], parts,
            dimension_numbers=(((1,), (1,)), ((), ())),
            preferred_element_type=jnp.float32)                  # (n_w, n_parts*P)
        pieces.append(nj)
    scratch = jnp.concatenate(pieces, axis=-1)                   # (n_w, n_parts*P*P)
    scratch = scratch.astype(jnp.bfloat16)                       # lossless (bf16-exact)

    # ONE full-width one-hot matmul per band: permutes lanes (j*P+i -> i*P+j)
    # and sums the split parts with exact f32 accumulation on the MXU.
    out = jnp.dot(scratch, perm_ref[...],
                  preferred_element_type=jnp.float32)            # (n_w, P*P)
    o_ref[0, 0] = out.astype(o_ref.dtype)


def image_patcher(x: jax.Array, patch_size: int, stride: int) -> jax.Array:
    """Pallas equivalent of ImagePatcher.forward: (B, H, W) -> (B, nH*nW, P*P)."""
    B, H, W = x.shape
    P = patch_size
    n_h = (H - P) // stride + 1
    n_w = (W - P) // stride + 1
    PP = P * P
    n_parts = 1 if x.dtype == jnp.bfloat16 else 3

    # One-hot gather constant (bf16: exact 0/1; halves resident VMEM + loads).
    j_ = jnp.arange(P)[:, None, None]
    c_ = jnp.arange(n_w)[None, :, None]
    w_ = jnp.arange(W)[None, None, :]
    gather_l = (w_ == c_ * stride + j_).astype(jnp.bfloat16)          # (P, n_w, W)

    # One-hot permutation + part-sum constant:
    #   perm[j*(n_parts*P) + p*P + i, i*P + j] = 1   for all p, i, j.
    G = n_parts * P
    a_ = jnp.arange(n_parts * PP)[:, None]       # a = j*G + p*P + i
    q_ = jnp.arange(PP)[None, :]                 # q = i*P + j
    perm = (q_ == (a_ % P) * P + (a_ // G)).astype(jnp.bfloat16)       # (n_parts*PP, PP)

    kernel = functools.partial(_patch_band_kernel, patch_size=P,
                               stride=stride, n_parts=n_parts)

    itemsize = jnp.dtype(x.dtype).itemsize
    # MXU-dominated cost (one-hot gathers + permutation matmul) plus pure I/O.
    flops = 2 * B * n_h * (P * n_w * W * (n_parts * P) + n_w * PP * (n_parts * PP))
    bytes_accessed = (B * H * W + B * n_h * n_w * PP) * itemsize \
        + (gather_l.size + perm.size) * 2

    # VMEM budget: double-buffered image / output blocks + resident constants.
    footprint = 2 * (H * W * itemsize) + 2 * (n_w * PP * itemsize) \
        + 2 * (gather_l.size + perm.size) * 2 + (1 << 20)
    vmem_limit = min(64 << 20, max(32 << 20, int(1.25 * footprint)))

    out4 = pl.pallas_call(
        kernel,
        out_shape=jax.ShapeDtypeStruct((B, n_h, n_w, PP), x.dtype),
        grid=(B, n_h),
        in_specs=[
            pl.BlockSpec((1, H, W), lambda b, r: (b, 0, 0)),      # image, resident over r
            pl.BlockSpec((P, n_w, W), lambda b, r: (0, 0, 0)),    # resident constant
            pl.BlockSpec((n_parts * PP, PP), lambda b, r: (0, 0)),  # resident constant
        ],
        out_specs=pl.BlockSpec((1, 1, n_w, PP), lambda b, r: (b, r, 0, 0)),
        compiler_params=pltpu.CompilerParams(
            dimension_semantics=("parallel", "parallel"),
            vmem_limit_bytes=vmem_limit),
        cost_estimate=pl.CostEstimate(
            flops=int(flops),
            transcendentals=0,
            bytes_accessed=int(bytes_accessed)),
    )(x, gather_l, perm)

    # Free metadata reshape: (B, n_h, n_w, P*P) and (B, n_h*n_w, P*P) share the
    # same HBM layout.
    return out4.reshape(B, n_h * n_w, PP)


def _reference_patcher(x: jax.Array, patch_size: int, stride: int) -> jax.Array:
    """Pure-JAX reference mirroring torch.unfold semantics (for verification)."""
    B, H, W = x.shape
    n_h = (H - patch_size) // stride + 1
    n_w = (W - patch_size) // stride + 1
    patches = []
    for r in range(n_h):
        for c in range(n_w):
            p = x[:, r * stride:r * stride + patch_size,
                     c * stride:c * stride + patch_size]
            patches.append(p.reshape(B, patch_size * patch_size))
    return jnp.stack(patches, axis=1)  # (B, nH*nW, P*P)


if __name__ == "__main__":
    # Small deterministic example: batch=2, 16x16 grayscale images,
    # patch_size=4, stride=patch_size//2=2 (as the module docstring suggests).
    B, H, W = 2, 16, 16
    patch_size, stride = 4, 2

    key = jax.random.PRNGKey(0)
    x = jax.random.normal(key, (B, H, W), dtype=jnp.float32)

    out = jax.block_until_ready(image_patcher(x, patch_size, stride))
    ref = _reference_patcher(x, patch_size, stride)

    n_h = (H - patch_size) // stride + 1
    n_w = (W - patch_size) // stride + 1
    assert out.shape == (B, n_h * n_w, patch_size * patch_size), out.shape
    assert jnp.allclose(out, ref, rtol=1e-6, atol=1e-6), \
        "Pallas output mismatch vs reference"

    print("KERNEL_OK")
</pallas_src>

<mosaic_0001>
module attributes {stable_mosaic.version = 11 : i64} {
  func.func @_patch_band_kernel(%arg0: i32, %arg1: i32, %arg2: memref<1x16x16xf32, #tpu.memory_space<vmem>>, %arg3: memref<4x7x16xbf16, #tpu.memory_space<vmem>>, %arg4: memref<48x16xbf16, #tpu.memory_space<vmem>>, %arg5: memref<1x1x7x16xf32, #tpu.memory_space<vmem>>) attributes {dimension_semantics = [#tpu.dimension_semantics<parallel>, #tpu.dimension_semantics<parallel>], iteration_bounds = array<i64: 2, 7>, scalar_prefetch = 0 : i64, scratch_operands = 0 : i64, tpu.core_type = #tpu.core_type<tc>, window_params = [{transform_indices = @transform_0, window_bounds = array<i64: 1, 16, 16>}, {pipeline_mode = #tpu.pipeline_mode<synchronous>, transform_indices = @transform_1, window_bounds = array<i64: 4, 7, 16>}, {pipeline_mode = #tpu.pipeline_mode<synchronous>, transform_indices = @transform_2, window_bounds = array<i64: 48, 16>}, {transform_indices = @transform_3, window_bounds = array<i64: 1, 1, 7, 16>}]} {
    %c2_i32 = arith.constant 2 : i32
    %0 = arith.muli %arg1, %c2_i32 : i32
    %1 = tpu.assume_multiple %0, 2 : i32
    %c0 = arith.constant 0 : index
    %2 = arith.index_cast %1 : i32 to index
    %c0_0 = arith.constant 0 : index
    %3 = vector.load %arg2[%c0, %2, %c0_0] : memref<1x16x16xf32, #tpu.memory_space<vmem>>, vector<1x4x16xf32>
    %4 = vector.shape_cast %3 : vector<1x4x16xf32> to vector<4x16xf32>
    %5 = arith.truncf %4 : vector<4x16xf32> to vector<4x16xbf16>
    %6 = arith.extf %5 : vector<4x16xbf16> to vector<4x16xf32>
    %7 = arith.subf %4, %6 : vector<4x16xf32>
    %8 = arith.truncf %7 : vector<4x16xf32> to vector<4x16xbf16>
    %9 = arith.extf %8 : vector<4x16xbf16> to vector<4x16xf32>
    %10 = arith.subf %7, %9 : vector<4x16xf32>
    %11 = arith.truncf %10 : vector<4x16xf32> to vector<4x16xbf16>
    %12 = tpu.concatenate %5, %8, %11 in 0 : vector<4x16xbf16>, vector<4x16xbf16>, vector<4x16xbf16> -> vector<12x16xbf16>
    %c0_1 = arith.constant 0 : index
    %c0_2 = arith.constant 0 : index
    %c0_3 = arith.constant 0 : index
    %13 = vector.load %arg3[%c0_1, %c0_2, %c0_3] : memref<4x7x16xbf16, #tpu.memory_space<vmem>>, vector<1x7x16xbf16>
    %14 = vector.shape_cast %13 : vector<1x7x16xbf16> to vector<7x16xbf16>
    %cst = arith.constant dense<0.000000e+00> : vector<7x12xf32>
    %15 = tpu.matmul %14, %12, %cst {dimension_numbers = #tpu.dot_dimension_numbers<[1], [1], [0], [0], [0, 0, 1, 0], [], []>} : vector<7x16xbf16>, vector<12x16xbf16>, vector<7x12xf32> -> vector<7x12xf32>
    %c1 = arith.constant 1 : index
    %c0_4 = arith.constant 0 : index
    %c0_5 = arith.constant 0 : index
    %16 = vector.load %arg3[%c1, %c0_4, %c0_5] : memref<4x7x16xbf16, #tpu.memory_space<vmem>>, vector<1x7x16xbf16>
    %17 = vector.shape_cast %16 : vector<1x7x16xbf16> to vector<7x16xbf16>
    %cst_6 = arith.constant dense<0.000000e+00> : vector<7x12xf32>
    %18 = tpu.matmul %17, %12, %cst_6 {dimension_numbers = #tpu.dot_dimension_numbers<[1], [1], [0], [0], [0, 0, 1, 0], [], []>} : vector<7x16xbf16>, vector<12x16xbf16>, vector<7x12xf32> -> vector<7x12xf32>
    %c2 = arith.constant 2 : index
    %c0_7 = arith.constant 0 : index
    %c0_8 = arith.constant 0 : index
    %19 = vector.load %arg3[%c2, %c0_7, %c0_8] : memref<4x7x16xbf16, #tpu.memory_space<vmem>>, vector<1x7x16xbf16>
    %20 = vector.shape_cast %19 : vector<1x7x16xbf16> to vector<7x16xbf16>
    %cst_9 = arith.constant dense<0.000000e+00> : vector<7x12xf32>
    %21 = tpu.matmul %20, %12, %cst_9 {dimension_numbers = #tpu.dot_dimension_numbers<[1], [1], [0], [0], [0, 0, 1, 0], [], []>} : vector<7x16xbf16>, vector<12x16xbf16>, vector<7x12xf32> -> vector<7x12xf32>
    %c3 = arith.constant 3 : index
    %c0_10 = arith.constant 0 : index
    %c0_11 = arith.constant 0 : index
    %22 = vector.load %arg3[%c3, %c0_10, %c0_11] : memref<4x7x16xbf16, #tpu.memory_space<vmem>>, vector<1x7x16xbf16>
    %23 = vector.shape_cast %22 : vector<1x7x16xbf16> to vector<7x16xbf16>
    %cst_12 = arith.constant dense<0.000000e+00> : vector<7x12xf32>
    %24 = tpu.matmul %23, %12, %cst_12 {dimension_numbers = #tpu.dot_dimension_numbers<[1], [1], [0], [0], [0, 0, 1, 0], [], []>} : vector<7x16xbf16>, vector<12x16xbf16>, vector<7x12xf32> -> vector<7x12xf32>
    %25 = tpu.concatenate %15, %18, %21, %24 in 1 : vector<7x12xf32>, vector<7x12xf32>, vector<7x12xf32>, vector<7x12xf32> -> vector<7x48xf32>
    %26 = arith.truncf %25 : vector<7x48xf32> to vector<7x48xbf16>
    %c0_13 = arith.constant 0 : index
    %c0_14 = arith.constant 0 : index
    %27 = vector.load %arg4[%c0_13, %c0_14] : memref<48x16xbf16, #tpu.memory_space<vmem>>, vector<48x16xbf16>
    %cst_15 = arith.constant dense<0.000000e+00> : vector<7x16xf32>
    %28 = tpu.matmul %26, %27, %cst_15 {dimension_numbers = #tpu.dot_dimension_numbers<[1], [0], [0], [1], [0, 0, 1, 1], [], []>} : vector<7x48xbf16>, vector<48x16xbf16>, vector<7x16xf32> -> vector<7x16xf32>
    %c0_16 = arith.constant 0 : index
    %c0_17 = arith.constant 0 : index
    %c0_18 = arith.constant 0 : index
    %c0_19 = arith.constant 0 : index
    %29 = vector.load %arg5[%c0_16, %c0_17, %c0_18, %c0_19] : memref<1x1x7x16xf32, #tpu.memory_space<vmem>>, vector<1x1x7x16xf32>
    %30 = vector.shape_cast %29 : vector<1x1x7x16xf32> to vector<7x16xf32>
    %31 = vector.shape_cast %28 : vector<7x16xf32> to vector<1x1x7x16xf32>
    tpu.vector_store %arg5[%c0_16, %c0_17, %c0_18, %c0_19], %31 {strides = array<i32>} : memref<1x1x7x16xf32, #tpu.memory_space<vmem>>, vector<1x1x7x16xf32>,
    return
  }
  func.func @transform_0(%arg0: i32, %arg1: i32) -> (i32, i32, i32) {
    %c0_i32 = arith.constant 0 : i32
    %c0_i32_0 = arith.constant 0 : i32
    %c0_i32_1 = arith.constant 0 : i32
    return %arg0, %c0_i32, %c0_i32_0 : i32, i32, i32
  }
  func.func @transform_1(%arg0: i32, %arg1: i32) -> (i32, i32, i32) {
    %c0_i32 = arith.constant 0 : i32
    %c0_i32_0 = arith.constant 0 : i32
    %c0_i32_1 = arith.constant 0 : i32
    %c0_i32_2 = arith.constant 0 : i32
    return %c0_i32, %c0_i32_0, %c0_i32_1 : i32, i32, i32
  }
  func.func @transform_2(%arg0: i32, %arg1: i32) -> (i32, i32) {
    %c0_i32 = arith.constant 0 : i32
    %c0_i32_0 = arith.constant 0 : i32
    %c0_i32_1 = arith.constant 0 : i32
    return %c0_i32, %c0_i32_0 : i32, i32
  }
  func.func @transform_3(%arg0: i32, %arg1: i32) -> (i32, i32, i32, i32) {
    %c0_i32 = arith.constant 0 : i32
    %c0_i32_0 = arith.constant 0 : i32
    %c0_i32_1 = arith.constant 0 : i32
    return %arg0, %arg1, %c0_i32, %c0_i32_0 : i32, i32, i32, i32
  }
}

</mosaic_0001>

<llo_original>
// kernel: tpu_custom_call.1
$region0: #{tpu_custom_call.1}
  #allocation0 [shape = 'u32[]', space=smem, size = 0x4, offset = 0x4, fixed_abs, tag = 'smem constant byte address 0x4 - core index']
  #allocation1 [shape = 'u32[144,128]{1,0:T(1,128)}', space=vmem, size = 0x12000, scoped, tag = 'internal scratch']
  %s0 = inlined_call_operand.vmem [shape: f32[2,16,16], index: 0, kind: input, shape index: {}]
  %s1 = inlined_call_operand.vmem [shape: bf16[4,7,16], index: 1, kind: input, shape index: {}]
  %s2 = inlined_call_operand.vmem [shape: bf16[48,16], index: 2, kind: input, shape index: {}]
  %s3 = inlined_call_operand.vmem [shape: f32[2,7,7,16], index: 3, kind: output, shape index: {}]
  %s4 = sld [smem:[#allocation0]]
  $region45: #{tpu_custom_call.1} parent=0
    _
  %s6 = ssub.s32 1, %s4
  %s7 = scalar_select 0, %s6, %s4
  loop: start=0, step=1, limit=16
  $region2: #{tpu_custom_call.1} parent=0 // loop_pre_header
    _
  $region3: #{tpu_custom_call.1} parent=0 // loop_header
    %s9 = sphi 0, %s13
    %p10 = scmp.ge.s32.totalorder %s9, 16
    %s16 = sphi 0, %s28
    %s17 = sphi 0, %s24
    %s18 = sphi 0, %s16
    %s19 = sphi 0, %s17
    %s20 = sphi 0, %s18
    %s21 = sphi 0, %s19
    %s31 = sphi 0, %s33
    %s34 = sphi 0, %s31
    %s35 = sphi 0, %s34
    %s51 = sphi 0, %s35
    %s55 = sphi 0, %s55
    %s57 = sphi 0, %s55
    %s58 = sphi 0, %s57
    %s72 = sphi 0, %s58
    %s76 = sphi 0, %s76
    %s78 = sphi 0, %s76
    %s79 = sphi 0, %s78
    %s93 = sphi 0, %s79
    %s101 = sphi 0, %s103
    %s104 = sphi 0, %s101
    %s105 = sphi 0, %s104
    %s121 = sphi 0, %s105
  $region4: #{tpu_custom_call.1} parent=0 // loop_header_branch
    %12 = sbr.rel (%p10) target = $region8
  $region5: #{tpu_custom_call.1} parent=0 // loop_body
    %s14 = ssub.s32 %s9, 1
    %s15 = ssub.s32 %s9, 2
    %s22 = sadd.s32 1, %s17
    %p23 = scmp.ge.s32.totalorder %s22, 7
    %s24 = scalar_select %p23, 0, %s22
    %s25 = sadd.s32 1, %s16
    %s26 = scalar_select %p23, %s25, %s16
    %p27 = scmp.ge.s32.totalorder %s26, 2
    %s28 = scalar_select %p27, 0, %s26
    %s29 = ssub.s32 %s16, %s28
    %p30 = scmp.eq.s32.totalorder %s29, 0
    %s32 = sadd.s32 %s31, 1
    %s33 = scalar_select %p30, %s31, %s32
    %p36 = pneg %p30
    %p37 = scmp.eq.s32.totalorder %s9, 13
    %p38 = por %p36, %p37
    %p39 = scmp.ne.s32.totalorder %s31, %s34
    %p40 = scmp.eq.s32.totalorder %s9, 0
    %p41 = por %p39, %p40
    %p42 = scmp.ne.s32.totalorder %s31, %s34
    %p43 = scmp.eq.s32.totalorder %s14, 13
    %p44 = por %p42, %p43
    %p45 = scmp.ne.s32.totalorder %s34, %s35
    %p46 = scmp.eq.s32.totalorder %s14, 0
    %p47 = por %p45, %p46
    %p48 = scmp.ne.s32.totalorder %s34, %s35
    %p49 = scmp.eq.s32.totalorder %s15, 13
    %p50 = por %p48, %p49
    %p52 = scmp.ne.s32.totalorder %s35, %s51
    %p53 = scmp.eq.s32.totalorder %s15, 0
    %p54 = por %p52, %p53
    %s56 = sadd.s32 %s55, 1
    %p59 = scmp.eq.s32.totalorder %s9, 13
    %p60 = scmp.ne.s32.totalorder %s55, %s57
    %p61 = scmp.eq.s32.totalorder %s9, 0
    %p62 = por %p60, %p61
    %p63 = scmp.ne.s32.totalorder %s55, %s57
    %p64 = scmp.eq.s32.totalorder %s14, 13
    %p65 = por %p63, %p64
    %p66 = scmp.ne.s32.totalorder %s57, %s58
    %p67 = scmp.eq.s32.totalorder %s14, 0
    %p68 = por %p66, %p67
    %p69 = scmp.ne.s32.totalorder %s57, %s58
    %p70 = scmp.eq.s32.totalorder %s15, 13
    %p71 = por %p69, %p70
    %p73 = scmp.ne.s32.totalorder %s58, %s72
    %p74 = scmp.eq.s32.totalorder %s15, 0
    %p75 = por %p73, %p74
    %s77 = sadd.s32 %s76, 1
    %p80 = scmp.eq.s32.totalorder %s9, 13
    %p81 = scmp.ne.s32.totalorder %s76, %s78
    %p82 = scmp.eq.s32.totalorder %s9, 0
    %p83 = por %p81, %p82
    %p84 = scmp.ne.s32.totalorder %s76, %s78
    %p85 = scmp.eq.s32.totalorder %s14, 13
    %p86 = por %p84, %p85
    %p87 = scmp.ne.s32.totalorder %s78, %s79
    %p88 = scmp.eq.s32.totalorder %s14, 0
    %p89 = por %p87, %p88
    %p90 = scmp.ne.s32.totalorder %s78, %s79
    %p91 = scmp.eq.s32.totalorder %s15, 13
    %p92 = por %p90, %p91
    %p94 = scmp.ne.s32.totalorder %s79, %s93
    %p95 = scmp.eq.s32.totalorder %s15, 0
    %p96 = por %p94, %p95
    %s97 = ssub.s32 %s16, %s28
    %s98 = ssub.s32 %s17, %s24
    %s99 = sor.u32 %s97, %s98
    %p100 = scmp.eq.s32.totalorder %s99, 0
    %s102 = sadd.s32 %s101, 1
    %s103 = scalar_select %p100, %s101, %s102
    %p106 = pneg %p100
    %p107 = scmp.eq.s32.totalorder %s9, 13
    %p108 = por %p106, %p107
    %p109 = scmp.ne.s32.totalorder %s101, %s104
    %p110 = scmp.eq.s32.totalorder %s9, 0
    %p111 = por %p109, %p110
    %p112 = scmp.ne.s32.totalorder %s101, %s104
    %p113 = scmp.eq.s32.totalorder %s14, 13
    %p114 = por %p112, %p113
    %p115 = scmp.ne.s32.totalorder %s104, %s105
    %p116 = scmp.eq.s32.totalorder %s14, 0
    %p117 = por %p115, %p116
    %p118 = scmp.ne.s32.totalorder %s104, %s105
    %p119 = scmp.eq.s32.totalorder %s15, 13
    %p120 = por %p118, %p119
    %p122 = scmp.ne.s32.totalorder %s105, %s121
    %p123 = scmp.eq.s32.totalorder %s15, 0
    %p124 = por %p122, %p123
    %p125 = scmp.le.s32.totalorder 1, %s9
    %p126 = scmp.lt.s32.totalorder %s9, 15
    %p127 = pnand %p125, %p126
    %p128 = pneg %p127
    // Predicated region
    $region9: #{tpu_custom_call.1} parent=5 // pred_check
      _
    $region10: #{tpu_custom_call.1} parent=5 // pred_check_branch
      %130 = sbr.rel (%p127) target = $region12
    $region11: #{tpu_custom_call.1} parent=5 // pred_region
      %s131 = ssub.s32 %s9, 1
      // Predicated region
      $region13: #{tpu_custom_call.1} parent=11 // pred_check
        %p132 = pneg %p68
      $region14: #{tpu_custom_call.1} parent=11 // pred_check_branch
        %134 = sbr.rel (%p132) target = $region16
      $region15: #{tpu_custom_call.1} parent=11 // pred_region
        _
      $region16: #{tpu_custom_call.1} parent=11 // pred_fallthru
        _
      // Predicated region
      $region17: #{tpu_custom_call.1} parent=11 // pred_check
        %p135 = pneg %p89
      $region18: #{tpu_custom_call.1} parent=11 // pred_check_branch
        %137 = sbr.rel (%p135) target = $region20
      $region19: #{tpu_custom_call.1} parent=11 // pred_region
        _
      $region20: #{tpu_custom_call.1} parent=11 // pred_fallthru
        _
    $region12: #{tpu_custom_call.1} parent=5 // pred_fallthru
      _
    %p138 = scmp.lt.s32.totalorder %s9, 14
    // Predicated region
    $region21: #{tpu_custom_call.1} parent=5 // pred_check
      %p139 = pneg %p138
    $region22: #{tpu_custom_call.1} parent=5 // pred_check_branch
      %141 = sbr.rel (%p139) target = $region24
    $region23: #{tpu_custom_call.1} parent=5 // pred_region
      // Predicated region
      $region25: #{tpu_custom_call.1} parent=23 // pred_check
        %p142 = pneg %p41
      $region26: #{tpu_custom_call.1} parent=23 // pred_check_branch
        %144 = sbr.rel (%p142) target = $region28
      $region27: #{tpu_custom_call.1} parent=23 // pred_region
        %p145 = scmp.lt.s32.totalorder %s16, 1
        %s146 = scalar_select %p145, %s16, 1
        %s147 = smul.addr %s146, 2
        %s148 = smul.addr %s147, 8
        %s149 = scalar_lea.vmem %s0, %s148
      $region28: #{tpu_custom_call.1} parent=23 // pred_fallthru
        _
    $region24: #{tpu_custom_call.1} parent=5 // pred_fallthru
      _
    %p150 = scmp.le.s32.totalorder 1, %s9
    %p151 = scmp.lt.s32.totalorder %s9, 15
    %p152 = pnand %p150, %p151
    %p153 = pneg %p152
    // Predicated region
    $region29: #{tpu_custom_call.1} parent=5 // pred_check
      _
    $region30: #{tpu_custom_call.1} parent=5 // pred_check_branch
      %155 = sbr.rel (%p152) target = $region32
    $region31: #{tpu_custom_call.1} parent=5 // pred_region
      %s156 = ssub.s32 %s9, 1
      %p157 = scmp.lt.s32.totalorder %s18, 1
      %s158 = scalar_select %p157, %s18, 1
      %s159 = smul.addr %s158, 2
      %s160 = smul.addr %s159, 8
      %s161 = scalar_lea.vmem %s0, %s160
      %p162 = pneg %p47
      %p163 = pneg %p44
      %p164 = pneg %p68
      %p165 = pneg %p65
      %p166 = pneg %p89
      %p167 = pneg %p86
      %p168 = pneg %p117
      %p169 = pneg %p114
      %p170 = scmp.lt.s32.totalorder %s18, 1
      %s171 = scalar_select %p170, %s18, 1
      %p172 = scmp.lt.s32.totalorder %s19, 6
      %s173 = scalar_select %p172, %s19, 6
      %s174 = smul.addr %s171, 7
      %s175 = sadd.s32 %s173, %s174
      %s176 = smul.addr %s175, 8
      %s177 = scalar_lea.vmem %s3, %s176
      %p178 = scmp.lt.s32.totalorder %s18, 1
      %s179 = scalar_select %p178, %s18, 1
      %s180 = smul.addr %s179, 2
      %s181 = smul.addr %s180, 8
      %s182 = scalar_lea.vmem %s0, %s181
      %p183 = scmp.lt.s32.totalorder %s18, 1
      %s184 = scalar_select %p183, %s18, 1
      %p185 = scmp.lt.s32.totalorder %s19, 6
      %s186 = scalar_select %p185, %s19, 6
      %s187 = smul.addr %s184, 7
      %s188 = sadd.s32 %s186, %s187
      %s189 = smul.addr %s188, 8
      %s190 = scalar_lea.vmem %s3, %s189
      %s192 = smul.u32 %s19, 2
      %s193 = scalar_lea.vmem %s182, %s192
      %v194 = vld [vmem:[%s193] sm:$0xf]
      %v195 = vpack.c.bf16 %v194, %v194
      %v196 = vunpack.c.l.bf16 %v195
      %v197 = vsub.f32 %v194, %v196
      %v198 = vpack.c.bf16 %v197, %v197
      %v199 = vunpack.c.l.bf16 %v198
      %v200 = vsub.f32 %v197, %v199
      %v201 = vpack.c.bf16 %v200, %v200
      %v203 = vrot.slane %v198, 6
      %v205 = vrot.slane %v201, 4
      %vm206 = vcmask 1041408
      %v209 = vsel %vm206, %v195, %v203
      %vm210 = vcmask 1043456
      %v212 = vsel %vm210, %v209, %v205
      %v213 = vld [vmem:[%s1] sm:$0xf]
      %vm214 = vcmask 130048
      %v216 = vsel %vm214, %v213, 0
      %v218 = vsel %vm214, %v212, 0
      %220 = vmatprep.subr.bf16.mxu0 0
      %221 = vmatpush1.bf16.xpose.msra.mxu0 0
      %222 = vmatprep.subr.bf16.mxu0 0
      %223 = vmatpush1.bf16.xpose.msra.mxu0 0
      %224 = vmatprep.subr.bf16.mxu0 0
      %225 = vmatpush1.bf16.xpose.msra.mxu0 0
      %226 = vmatprep.subr.bf16.mxu0 0
      %227 = vmatpush1.bf16.xpose.msra.mxu0 0
      %228 = vmatprep.subr.bf16.mxu0 0
      %229 = vmatpush1.bf16.xpose.msra.mxu0 0
      %230 = vmatprep.subr.bf16.mxu0 0
      %231 = vmatpush1.bf16.xpose.msra.mxu0 0
      %232 = vmatprep.subr.bf16.mxu0 0
      %233 = vmatpush1.bf16.xpose.msra.mxu0 0
      %234 = vmatprep.subr.bf16.mxu0 0
      %235 = vmatpush1.bf16.xpose.msra.mxu0 %v218
      %236 = vmatprep.subr.bf16.mxu0 0
      %237 = vmatpush2.bf16.xpose.msra.mxu0 0
      %238 = vmatprep.subr.bf16.mxu0 0
      %239 = vmatpush2.bf16.xpose.msra.mxu0 0
      %240 = vmatprep.subr.bf16.mxu0 0
      %241 = vmatpush2.bf16.xpose.msra.mxu0 0
      %242 = vmatprep.subr.bf16.mxu0 0
      %243 = vmatpush2.bf16.xpose.msra.mxu0 0
      %244 = vmatprep.subr.bf16.mxu0 0
      %245 = vmatpush2.bf16.xpose.msra.mxu0 0
      %246 = vmatprep.subr.bf16.mxu0 0
      %247 = vmatpush2.bf16.xpose.msra.mxu0 0
      %248 = vmatprep.subr.bf16.mxu0 0
      %249 = vmatpush2.bf16.xpose.msra.mxu0 0
      %250 = vmatprep.subr.bf16.mxu0 0
      %251 = vmatpush2.bf16.xpose.msra.mxu0 0
      %252 = vmatprep.mubr.bf16.mxu0 0
      %253 = vmatmul.mubr.bf16.gmra.mxu0 %v216
      %v254 = vpop.f32.mrf.mxu0
      %v255 = vadd.f32 0.0, %v254
      %v256 = vpop.f32.mrf.mxu0
      %v257 = vpop.f32.mrf.mxu0
      %v258 = vpop.f32.mrf.mxu0
      %259 = vdwg.mxu0
      %s260 = scalar_lea.vmem %s1, 4
      %v261 = vld [vmem:[%s260] sm:$0xf]
      %v263 = vsel %vm214, %v261, 0
      %265 = vmatprep.subr.bf16.mxu0 0
      %266 = vmatpush1.bf16.xpose.msra.mxu0 0
      %267 = vmatprep.subr.bf16.mxu0 0
      %268 = vmatpush1.bf16.xpose.msra.mxu0 0
      %269 = vmatprep.subr.bf16.mxu0 0
      %270 = vmatpush1.bf16.xpose.msra.mxu0 0
      %271 = vmatprep.subr.bf16.mxu0 0
      %272 = vmatpush1.bf16.xpose.msra.mxu0 0
      %273 = vmatprep.subr.bf16.mxu0 0
      %274 = vmatpush1.bf16.xpose.msra.mxu0 0
      %275 = vmatprep.subr.bf16.mxu0 0
      %276 = vmatpush1.bf16.xpose.msra.mxu0 0
      %277 = vmatprep.subr.bf16.mxu0 0
      %278 = vmatpush1.bf16.xpose.msra.mxu0 0
      %279 = vmatprep.subr.bf16.mxu0 0
      %280 = vmatpush1.bf16.xpose.msra.mxu0 %v218
      %281 = vmatprep.subr.bf16.mxu0 0
      %282 = vmatpush2.bf16.xpose.msra.mxu0 0
      %283 = vmatprep.subr.bf16.mxu0 0
      %284 = vmatpush2.bf16.xpose.msra.mxu0 0
      %285 = vmatprep.subr.bf16.mxu0 0
      %286 = vmatpush2.bf16.xpose.msra.mxu0 0
      %287 = vmatprep.subr.bf16.mxu0 0
      %288 = vmatpush2.bf16.xpose.msra.mxu0 0
      %289 = vmatprep.subr.bf16.mxu0 0
      %290 = vmatpush2.bf16.xpose.msra.mxu0 0
      %291 = vmatprep.subr.bf16.mxu0 0
      %292 = vmatpush2.bf16.xpose.msra.mxu0 0
      %293 = vmatprep.subr.bf16.mxu0 0
      %294 = vmatpush2.bf16.xpose.msra.mxu0 0
      %295 = vmatprep.subr.bf16.mxu0 0
      %296 = vmatpush2.bf16.xpose.msra.mxu0 0
      %297 = vmatprep.mubr.bf16.mxu0 0
      %298 = vmatmul.mubr.bf16.gmra.mxu0 %v263
      %v299 = vpop.f32.mrf.mxu0
      %v300 = vadd.f32 0.0, %v299
      %v301 = vpop.f32.mrf.mxu0
      %v302 = vpop.f32.mrf.mxu0
      %v303 = vpop.f32.mrf.mxu0
      %304 = vdwg.mxu0
      %s305 = scalar_lea.vmem %s1, 8
      %v306 = vld [vmem:[%s305] sm:$0xf]
      %v308 = vsel %vm214, %v306, 0
      %310 = vmatprep.subr.bf16.mxu0 0
      %311 = vmatpush1.bf16.xpose.msra.mxu0 0
      %312 = vmatprep.subr.bf16.mxu0 0
      %313 = vmatpush1.bf16.xpose.msra.mxu0 0
      %314 = vmatprep.subr.bf16.mxu0 0
      %315 = vmatpush1.bf16.xpose.msra.mxu0 0
      %316 = vmatprep.subr.bf16.mxu0 0
      %317 = vmatpush1.bf16.xpose.msra.mxu0 0
      %318 = vmatprep.subr.bf16.mxu0 0
      %319 = vmatpush1.bf16.xpose.msra.mxu0 0
      %320 = vmatprep.subr.bf16.mxu0 0
      %321 = vmatpush1.bf16.xpose.msra.mxu0 0
      %322 = vmatprep.subr.bf16.mxu0 0
      %323 = vmatpush1.bf16.xpose.msra.mxu0 0
      %324 = vmatprep.subr.bf16.mxu0 0
      %325 = vmatpush1.bf16.xpose.msra.mxu0 %v218
      %326 = vmatprep.subr.bf16.mxu0 0
      %327 = vmatpush2.bf16.xpose.msra.mxu0 0
      %328 = vmatprep.subr.bf16.mxu0 0
      %329 = vmatpush2.bf16.xpose.msra.mxu0 0
      %330 = vmatprep.subr.bf16.mxu0 0
      %331 = vmatpush2.bf16.xpose.msra.mxu0 0
      %332 = vmatprep.subr.bf16.mxu0 0
      %333 = vmatpush2.bf16.xpose.msra.mxu0 0
      %334 = vmatprep.subr.bf16.mxu0 0
      %335 = vmatpush2.bf16.xpose.msra.mxu0 0
      %336 = vmatprep.subr.bf16.mxu0 0
      %337 = vmatpush2.bf16.xpose.msra.mxu0 0
      %338 = vmatprep.subr.bf16.mxu0 0
      %339 = vmatpush2.bf16.xpose.msra.mxu0 0
      %340 = vmatprep.subr.bf16.mxu0 0
      %341 = vmatpush2.bf16.xpose.msra.mxu0 0
      %342 = vmatprep.mubr.bf16.mxu0 0
      %343 = vmatmul.mubr.bf16.gmra.mxu0 %v308
      %v344 = vpop.f32.mrf.mxu0
      %v345 = vadd.f32 0.0, %v344
      %v346 = vpop.f32.mrf.mxu0
      %v347 = vpop.f32.mrf.mxu0
      %v348 = vpop.f32.mrf.mxu0
      %349 = vdwg.mxu0
      %s350 = scalar_lea.vmem %s1, 12
      %v351 = vld [vmem:[%s350] sm:$0xf]
      %v353 = vsel %vm214, %v351, 0
      %355 = vmatprep.subr.bf16.mxu0 0
      %356 = vmatpush1.bf16.xpose.msra.mxu0 0
      %357 = vmatprep.subr.bf16.mxu0 0
      %358 = vmatpush1.bf16.xpose.msra.mxu0 0
      %359 = vmatprep.subr.bf16.mxu0 0
      %360 = vmatpush1.bf16.xpose.msra.mxu0 0
      %361 = vmatprep.subr.bf16.mxu0 0
      %362 = vmatpush1.bf16.xpose.msra.mxu0 0
      %363 = vmatprep.subr.bf16.mxu0 0
      %364 = vmatpush1.bf16.xpose.msra.mxu0 0
      %365 = vmatprep.subr.bf16.mxu0 0
      %366 = vmatpush1.bf16.xpose.msra.mxu0 0
      %367 = vmatprep.subr.bf16.mxu0 0
      %368 = vmatpush1.bf16.xpose.msra.mxu0 0
      %369 = vmatprep.subr.bf16.mxu0 0
      %370 = vmatpush1.bf16.xpose.msra.mxu0 %v218
      %371 = vmatprep.subr.bf16.mxu0 0
      %372 = vmatpush2.bf16.xpose.msra.mxu0 0
      %373 = vmatprep.subr.bf16.mxu0 0
      %374 = vmatpush2.bf16.xpose.msra.mxu0 0
      %375 = vmatprep.subr.bf16.mxu0 0
      %376 = vmatpush2.bf16.xpose.msra.mxu0 0
      %377 = vmatprep.subr.bf16.mxu0 0
      %378 = vmatpush2.bf16.xpose.msra.mxu0 0
      %379 = vmatprep.subr.bf16.mxu0 0
      %380 = vmatpush2.bf16.xpose.msra.mxu0 0
      %381 = vmatprep.subr.bf16.mxu0 0
      %382 = vmatpush2.bf16.xpose.msra.mxu0 0
      %383 = vmatprep.subr.bf16.mxu0 0
      %384 = vmatpush2.bf16.xpose.msra.mxu0 0
      %385 = vmatprep.subr.bf16.mxu0 0
      %386 = vmatpush2.bf16.xpose.msra.mxu0 0
      %387 = vmatprep.mubr.bf16.mxu0 0
      %388 = vmatmul.mubr.bf16.gmra.mxu0 %v353
      %v389 = vpop.f32.mrf.mxu0
      %v390 = vadd.f32 0.0, %v389
      %v391 = vpop.f32.mrf.mxu0
      %v392 = vpop.f32.mrf.mxu0
      %v393 = vpop.f32.mrf.mxu0
      %394 = vdwg.mxu0
      %396 = vrot.lane.b32.xlu0 %v300, 12
      %v397 = vpop.permute.xlu0 %396
      %400 = vrot.lane.b32.xlu0 %v345, 24
      %v401 = vpop.permute.xlu0 %400
      %404 = vrot.lane.b32.xlu0 %v390, 36
      %v405 = vpop.permute.xlu0 %404
      %vm407 = vcmask 97280
      %v408 = vsel %vm407, %v255, %v397
      %vm409 = vcmask 195584
      %v410 = vsel %vm409, %v408, %v401
      %vm411 = vcmask 293888
      %v412 = vsel %vm411, %v410, %v405
      %v413 = vpack.c.bf16 %v412, %v412
      %v414 = vld [vmem:[%s2] sm:$0xf]
      %v415 = vld [vmem:[%s2 + $0x4] sm:$0xf]
      %v416 = vld [vmem:[%s2 + $0x8] sm:$0xf]
      %v417 = vld [vmem:[%s2 + $0xc] sm:$0xf]
      %v418 = vld [vmem:[%s2 + $0x10] sm:$0xf]
      %v419 = vld [vmem:[%s2 + $0x14] sm:$0xf]
      %v426 = vunpack.c.l.b16 %v414
      %v427 = vunpack.c.l.b16 %v415
      %v428 = vunpack.c.l.b16 %v416
      %v429 = vunpack.c.l.b16 %v417
      %v430 = vunpack.c.l.b16 %v418
      %v431 = vunpack.c.l.b16 %v419
      %v432 = vpack.c.b16 %v427, %v426
      %v433 = vpack.c.b16 %v429, %v428
      %v434 = vpack.c.b16 %v431, %v430
      %vm438 = vcmask 392192
      %v440 = vsel %vm438, %v413, 0
      %442 = vmatprep.subr.bf16.mxu0 0
      %443 = vmatpush1.bf16.msra.mxu0 0
      %444 = vmatprep.subr.bf16.mxu0 0
      %445 = vmatpush1.bf16.msra.mxu0 0
      %446 = vmatprep.subr.bf16.mxu0 0
      %447 = vmatpush1.bf16.msra.mxu0 0
      %448 = vmatprep.subr.bf16.mxu0 0
      %449 = vmatpush1.bf16.msra.mxu0 0
      %450 = vmatprep.subr.bf16.mxu0 0
      %451 = vmatpush1.bf16.msra.mxu0 0
      %452 = vmatprep.subr.bf16.mxu0 0
      %453 = vmatpush1.bf16.msra.mxu0 %v434
      %454 = vmatprep.subr.bf16.mxu0 0
      %455 = vmatpush1.bf16.msra.mxu0 %v433
      %456 = vmatprep.subr.bf16.mxu0 0
      %457 = vmatpush1.bf16.msra.mxu0 %v432
      %458 = vmatprep.subr.bf16.mxu0 0
      %459 = vmatpush2.bf16.msra.mxu0 0
      %460 = vmatprep.subr.bf16.mxu0 0
      %461 = vmatpush2.bf16.msra.mxu0 0
      %462 = vmatprep.subr.bf16.mxu0 0
      %463 = vmatpush2.bf16.msra.mxu0 0
      %464 = vmatprep.subr.bf16.mxu0 0
      %465 = vmatpush2.bf16.msra.mxu0 0
      %466 = vmatprep.subr.bf16.mxu0 0
      %467 = vmatpush2.bf16.msra.mxu0 0
      %468 = vmatprep.subr.bf16.mxu0 0
      %469 = vmatpush2.bf16.msra.mxu0 0
      %470 = vmatprep.subr.bf16.mxu0 0
      %471 = vmatpush2.bf16.msra.mxu0 0
      %472 = vmatprep.subr.bf16.mxu0 0
      %473 = vmatpush2.bf16.msra.mxu0 0
      %474 = vmatprep.mubr.bf16.mxu0 0
      %475 = vmatmul.mubr.bf16.gmra.mxu0 %v440
      %v476 = vpop.f32.mrf.mxu0
      %v477 = vadd.f32 0.0, %v476
      %v478 = vpop.f32.mrf.mxu0
      %v479 = vpop.f32.mrf.mxu0
      %v480 = vpop.f32.mrf.mxu0
      %481 = vdwg.mxu0
      %vm482 = vcmask 129024
      %483 = vst.msk [vmem:[%s190] sm:$0x7f] %vm482, %v477
      %p484 = scmp.lt.s32.totalorder %s18, 1
      %s485 = scalar_select %p484, %s18, 1
      %p486 = scmp.lt.s32.totalorder %s19, 6
      %s487 = scalar_select %p486, %s19, 6
      %s488 = smul.addr %s485, 7
      %s489 = sadd.s32 %s487, %s488
      %s490 = smul.addr %s489, 8
      %s491 = scalar_lea.vmem %s3, %s490
      // Predicated region
      $region33: #{tpu_custom_call.1} parent=31 // pred_check
        %p492 = pneg %p114
      $region34: #{tpu_custom_call.1} parent=31 // pred_check_branch
        %494 = sbr.rel (%p492) target = $region36
      $region35: #{tpu_custom_call.1} parent=31 // pred_region
        _
      $region36: #{tpu_custom_call.1} parent=31 // pred_fallthru
        _
    $region32: #{tpu_custom_call.1} parent=5 // pred_fallthru
      _
    %p495 = scmp.le.s32.totalorder 2, %s9
    // Predicated region
    $region37: #{tpu_custom_call.1} parent=5 // pred_check
      %p496 = pneg %p495
    $region38: #{tpu_custom_call.1} parent=5 // pred_check_branch
      %498 = sbr.rel (%p496) target = $region40
    $region39: #{tpu_custom_call.1} parent=5 // pred_region
      %s499 = ssub.s32 %s9, 2
      // Predicated region
      $region41: #{tpu_custom_call.1} parent=39 // pred_check
        %p500 = pneg %p120
      $region42: #{tpu_custom_call.1} parent=39 // pred_check_branch
        %502 = sbr.rel (%p500) target = $region44
      $region43: #{tpu_custom_call.1} parent=39 // pred_region
        %p503 = scmp.lt.s32.totalorder %s20, 1
        %s504 = scalar_select %p503, %s20, 1
        %p505 = scmp.lt.s32.totalorder %s21, 6
        %s506 = scalar_select %p505, %s21, 6
        %s507 = smul.addr %s504, 7
        %s508 = sadd.s32 %s506, %s507
        %s509 = smul.addr %s508, 8
        %s510 = scalar_lea.vmem %s3, %s509
      $region44: #{tpu_custom_call.1} parent=39 // pred_fallthru
        _
    $region40: #{tpu_custom_call.1} parent=5 // pred_fallthru
      _
  $region6: #{tpu_custom_call.1} parent=0 // loop_footer
    %s13 = sadd.s32 1, %s9
  $region7: #{tpu_custom_call.1} parent=0 // loop_footer_branch
    %8 = sbr.rel target = $region3
  $region8: #{tpu_custom_call.1} parent=0 // loop_exit
    _

</llo_original>
